<compile_context>
chip_gen: v7x
topology: tpu7x:2x2x1
jax: 0.10.0
libtpu: 0.0.40
codegen_flags: <defaults>
</compile_context>

<pallas_src>
import functools

import jax
import jax.numpy as jnp
import numpy as np
from jax.experimental import pallas as pl
from jax.experimental.pallas import tpu as pltpu

_LANES = 128


def _round_up(x, m):
    return ((x + m - 1) // m) * m


def _compute_loss_block(boxes_ref, loss_type):
    """boxes_ref: (8, TR, 128) block -> (TR, 128) per-box loss."""
    px = boxes_ref[0]
    py = boxes_ref[1]
    pw = boxes_ref[2]
    ph = boxes_ref[3]
    tx = boxes_ref[4]
    ty = boxes_ref[5]
    tw = boxes_ref[6]
    th = boxes_ref[7]

    pw2 = pw * 0.5
    ph2 = ph * 0.5
    tw2 = tw * 0.5
    th2 = th * 0.5

    p_l = px - pw2
    p_r = px + pw2
    p_t = py - ph2
    p_b = py + ph2
    g_l = tx - tw2
    g_r = tx + tw2
    g_t = ty - th2
    g_b = ty + th2

    # intersection corners
    tl_x = jnp.maximum(p_l, g_l)
    tl_y = jnp.maximum(p_t, g_t)
    br_x = jnp.minimum(p_r, g_r)
    br_y = jnp.minimum(p_b, g_b)

    area_p = pw * ph
    area_g = tw * th

    inter = (br_x - tl_x) * (br_y - tl_y)
    area_i = jnp.where((tl_x < br_x) & (tl_y < br_y), inter, 0.0)
    area_u = area_p + area_g - area_i
    iou = area_i / (area_u + 1e-16)

    if loss_type == "iou":
        loss = 1.0 - iou * iou
    elif loss_type == "giou":
        # enclosing box (reuse the per-box corners computed above)
        c_w = jnp.maximum(p_r, g_r) - jnp.minimum(p_l, g_l)
        c_h = jnp.maximum(p_b, g_b) - jnp.minimum(p_t, g_t)
        area_c = c_w * c_h
        giou = iou - (area_c - area_u) / jnp.maximum(area_c, 1e-16)
        loss = 1.0 - jnp.clip(giou, -1.0, 1.0)
    else:
        raise ValueError(f"unknown loss_type: {loss_type}")
    return loss


def _iou_loss_kernel_none(boxes_ref, out_ref, *, loss_type):
    out_ref[...] = _compute_loss_block(boxes_ref, loss_type)


def _iou_loss_kernel_sum(boxes_ref, out_ref, *, loss_type, n, tile_rows):
    """Accumulates a masked partial sum into a resident (8, 128) output."""
    i = pl.program_id(0)
    loss = _compute_loss_block(boxes_ref, loss_type)  # (TR, 128)

    # mask padded lanes: global box index = (i*TR + row) * 128 + lane
    row = jax.lax.broadcasted_iota(jnp.int32, loss.shape, 0)
    lane = jax.lax.broadcasted_iota(jnp.int32, loss.shape, 1)
    idx = (i * tile_rows + row) * _LANES + lane
    masked = jnp.where(idx < n, loss, 0.0)

    # fold (TR, 128) -> (8, 128) with full-vreg adds (static unrolled loop)
    partial = masked[0:8, :]
    for r0 in range(8, tile_rows, 8):
        partial = partial + masked[r0:r0 + 8, :]

    @pl.when(i == 0)
    def _():
        out_ref[...] = jnp.zeros_like(out_ref)

    out_ref[...] += partial


def iou_loss(pred, target, reduction="none", loss_type="iou", tile_rows=512):
    """JAX/Pallas equivalent of yolox IOUloss.forward."""
    assert pred.shape[0] == target.shape[0]
    pred = pred.reshape(-1, 4).astype(jnp.float32)
    target = target.reshape(-1, 4).astype(jnp.float32)
    n = pred.shape[0]

    tile_rows = _round_up(max(int(tile_rows), 8), 8)
    rows = -(-n // _LANES)                       # cdiv
    tr = min(tile_rows, _round_up(max(rows, 1), 8))
    rows_pad = _round_up(max(rows, 1), tr)
    n_pad = rows_pad * _LANES

    # single stacked, lane-dense input: rows 0-3 pred, rows 4-7 target
    boxes = jnp.concatenate([pred, target], axis=1).T          # (8, n)
    boxes = jnp.pad(boxes, ((0, 0), (0, n_pad - n)))           # (8, n_pad)
    boxes = boxes.reshape(8, rows_pad, _LANES)                 # (8, R, 128)

    grid = (rows_pad // tr,)
    in_specs = [pl.BlockSpec((8, tr, _LANES), lambda i: (0, i, 0))]

    if reduction == "none":
        out = pl.pallas_call(
            functools.partial(_iou_loss_kernel_none, loss_type=loss_type),
            out_shape=jax.ShapeDtypeStruct((rows_pad, _LANES), jnp.float32),
            grid=grid,
            in_specs=in_specs,
            out_specs=pl.BlockSpec((tr, _LANES), lambda i: (i, 0)),
            compiler_params=pltpu.CompilerParams(
                dimension_semantics=("parallel",)),
        )(boxes)
        return out.reshape(-1)[:n]

    if reduction not in ("mean", "sum"):
        raise ValueError(f"unknown reduction: {reduction}")

    # fused reduction: (8, 128) accumulator stays resident across the grid
    partial = pl.pallas_call(
        functools.partial(_iou_loss_kernel_sum, loss_type=loss_type,
                          n=n, tile_rows=tr),
        out_shape=jax.ShapeDtypeStruct((8, _LANES), jnp.float32),
        grid=grid,
        in_specs=in_specs,
        out_specs=pl.BlockSpec((8, _LANES), lambda i: (0, 0)),
        compiler_params=pltpu.CompilerParams(
            dimension_semantics=("arbitrary",)),
    )(boxes)
    total = jnp.sum(partial)
    if reduction == "mean":
        return total / n
    return total


def _iou_loss_ref(pred, target, reduction="none", loss_type="iou"):
    """Pure-JAX reference mirroring the PyTorch module."""
    pred = pred.reshape(-1, 4).astype(jnp.float32)
    target = target.reshape(-1, 4).astype(jnp.float32)
    tl = jnp.maximum(pred[:, :2] - pred[:, 2:] / 2, target[:, :2] - target[:, 2:] / 2)
    br = jnp.minimum(pred[:, :2] + pred[:, 2:] / 2, target[:, :2] + target[:, 2:] / 2)
    area_p = jnp.prod(pred[:, 2:], axis=1)
    area_g = jnp.prod(target[:, 2:], axis=1)
    en = jnp.prod((tl < br).astype(jnp.float32), axis=1)
    area_i = jnp.prod(br - tl, axis=1) * en
    area_u = area_p + area_g - area_i
    iou = area_i / (area_u + 1e-16)
    if loss_type == "iou":
        loss = 1 - iou ** 2
    else:
        c_tl = jnp.minimum(pred[:, :2] - pred[:, 2:] / 2, target[:, :2] - target[:, 2:] / 2)
        c_br = jnp.maximum(pred[:, :2] + pred[:, 2:] / 2, target[:, :2] + target[:, 2:] / 2)
        area_c = jnp.prod(c_br - c_tl, axis=1)
        giou = iou - (area_c - area_u) / jnp.maximum(area_c, 1e-16)
        loss = 1 - jnp.clip(giou, -1.0, 1.0)
    if reduction == "mean":
        loss = loss.mean()
    elif reduction == "sum":
        loss = loss.sum()
    return loss


def _make_boxes(key, n):
    k1, k2, k3, k4 = jax.random.split(key, 4)
    pred_xy = jax.random.uniform(k1, (n, 2), minval=0.0, maxval=16.0)
    pred_wh = jax.random.uniform(k2, (n, 2), minval=0.5, maxval=8.0)
    tgt_xy = jax.random.uniform(k3, (n, 2), minval=0.0, maxval=16.0)
    tgt_wh = jax.random.uniform(k4, (n, 2), minval=0.5, maxval=8.0)
    pred = jnp.concatenate([pred_xy, pred_wh], axis=1)
    target = jnp.concatenate([tgt_xy, tgt_wh], axis=1)
    return pred, target


if __name__ == "__main__":
    key = jax.random.PRNGKey(0)
    k_a, k_b, k_c = jax.random.split(key, 3)

    # (N, tile_rows) cases: small N, non-multiple-of-128 N (mask check),
    # and a tiny tile to exercise multi-step grid + accumulator path.
    cases = [(_make_boxes(k_a, 16), 512),
             (_make_boxes(k_b, 777), 512),
             (_make_boxes(k_c, 2000), 8)]

    for (pred, target), tr in cases:
        for loss_type in ("iou", "giou"):
            for reduction in ("none", "mean", "sum"):
                out = iou_loss(pred, target, reduction=reduction,
                               loss_type=loss_type, tile_rows=tr)
                out = jax.block_until_ready(out)
                ref = _iou_loss_ref(pred, target, reduction=reduction,
                                    loss_type=loss_type)
                np.testing.assert_allclose(np.asarray(out), np.asarray(ref),
                                           rtol=1e-5, atol=1e-5)

    print("KERNEL_OK")
</pallas_src>

<mosaic_0001>
module attributes {stable_mosaic.version = 11 : i64} {
  func.func @_iou_loss_kernel_none(%arg0: i32, %arg1: memref<8x8x128xf32, #tpu.memory_space<vmem>>, %arg2: memref<8x128xf32, #tpu.memory_space<vmem>>) attributes {dimension_semantics = [#tpu.dimension_semantics<parallel>], iteration_bounds = array<i64: 1>, scalar_prefetch = 0 : i64, scratch_operands = 0 : i64, tpu.core_type = #tpu.core_type<tc>, window_params = [{transform_indices = @transform_0, window_bounds = array<i64: 8, 8, 128>}, {transform_indices = @transform_1, window_bounds = array<i64: 8, 128>}]} {
    %c0 = arith.constant 0 : index
    %c0_0 = arith.constant 0 : index
    %c0_1 = arith.constant 0 : index
    %0 = vector.load %arg1[%c0, %c0_0, %c0_1] : memref<8x8x128xf32, #tpu.memory_space<vmem>>, vector<1x8x128xf32>
    %1 = vector.shape_cast %0 : vector<1x8x128xf32> to vector<8x128xf32>
    %c1 = arith.constant 1 : index
    %c0_2 = arith.constant 0 : index
    %c0_3 = arith.constant 0 : index
    %2 = vector.load %arg1[%c1, %c0_2, %c0_3] : memref<8x8x128xf32, #tpu.memory_space<vmem>>, vector<1x8x128xf32>
    %3 = vector.shape_cast %2 : vector<1x8x128xf32> to vector<8x128xf32>
    %c2 = arith.constant 2 : index
    %c0_4 = arith.constant 0 : index
    %c0_5 = arith.constant 0 : index
    %4 = vector.load %arg1[%c2, %c0_4, %c0_5] : memref<8x8x128xf32, #tpu.memory_space<vmem>>, vector<1x8x128xf32>
    %5 = vector.shape_cast %4 : vector<1x8x128xf32> to vector<8x128xf32>
    %c3 = arith.constant 3 : index
    %c0_6 = arith.constant 0 : index
    %c0_7 = arith.constant 0 : index
    %6 = vector.load %arg1[%c3, %c0_6, %c0_7] : memref<8x8x128xf32, #tpu.memory_space<vmem>>, vector<1x8x128xf32>
    %7 = vector.shape_cast %6 : vector<1x8x128xf32> to vector<8x128xf32>
    %c4 = arith.constant 4 : index
    %c0_8 = arith.constant 0 : index
    %c0_9 = arith.constant 0 : index
    %8 = vector.load %arg1[%c4, %c0_8, %c0_9] : memref<8x8x128xf32, #tpu.memory_space<vmem>>, vector<1x8x128xf32>
    %9 = vector.shape_cast %8 : vector<1x8x128xf32> to vector<8x128xf32>
    %c5 = arith.constant 5 : index
    %c0_10 = arith.constant 0 : index
    %c0_11 = arith.constant 0 : index
    %10 = vector.load %arg1[%c5, %c0_10, %c0_11] : memref<8x8x128xf32, #tpu.memory_space<vmem>>, vector<1x8x128xf32>
    %11 = vector.shape_cast %10 : vector<1x8x128xf32> to vector<8x128xf32>
    %c6 = arith.constant 6 : index
    %c0_12 = arith.constant 0 : index
    %c0_13 = arith.constant 0 : index
    %12 = vector.load %arg1[%c6, %c0_12, %c0_13] : memref<8x8x128xf32, #tpu.memory_space<vmem>>, vector<1x8x128xf32>
    %13 = vector.shape_cast %12 : vector<1x8x128xf32> to vector<8x128xf32>
    %c7 = arith.constant 7 : index
    %c0_14 = arith.constant 0 : index
    %c0_15 = arith.constant 0 : index
    %14 = vector.load %arg1[%c7, %c0_14, %c0_15] : memref<8x8x128xf32, #tpu.memory_space<vmem>>, vector<1x8x128xf32>
    %15 = vector.shape_cast %14 : vector<1x8x128xf32> to vector<8x128xf32>
    %cst = arith.constant 5.000000e-01 : f32
    %16 = vector.broadcast %cst : f32 to vector<8x128xf32>
    %17 = arith.mulf %5, %16 : vector<8x128xf32>
    %cst_16 = arith.constant 5.000000e-01 : f32
    %18 = vector.broadcast %cst_16 : f32 to vector<8x128xf32>
    %19 = arith.mulf %7, %18 : vector<8x128xf32>
    %cst_17 = arith.constant 5.000000e-01 : f32
    %20 = vector.broadcast %cst_17 : f32 to vector<8x128xf32>
    %21 = arith.mulf %13, %20 : vector<8x128xf32>
    %cst_18 = arith.constant 5.000000e-01 : f32
    %22 = vector.broadcast %cst_18 : f32 to vector<8x128xf32>
    %23 = arith.mulf %15, %22 : vector<8x128xf32>
    %24 = arith.subf %1, %17 : vector<8x128xf32>
    %25 = arith.addf %1, %17 : vector<8x128xf32>
    %26 = arith.subf %3, %19 : vector<8x128xf32>
    %27 = arith.addf %3, %19 : vector<8x128xf32>
    %28 = arith.subf %9, %21 : vector<8x128xf32>
    %29 = arith.addf %9, %21 : vector<8x128xf32>
    %30 = arith.subf %11, %23 : vector<8x128xf32>
    %31 = arith.addf %11, %23 : vector<8x128xf32>
    %32 = arith.maximumf %24, %28 : vector<8x128xf32>
    %33 = arith.maximumf %26, %30 : vector<8x128xf32>
    %34 = arith.minimumf %25, %29 : vector<8x128xf32>
    %35 = arith.minimumf %27, %31 : vector<8x128xf32>
    %36 = arith.mulf %5, %7 : vector<8x128xf32>
    %37 = arith.mulf %13, %15 : vector<8x128xf32>
    %38 = arith.subf %34, %32 : vector<8x128xf32>
    %39 = arith.subf %35, %33 : vector<8x128xf32>
    %40 = arith.mulf %38, %39 : vector<8x128xf32>
    %41 = arith.cmpf olt, %32, %34 : vector<8x128xf32>
    %42 = arith.cmpf olt, %33, %35 : vector<8x128xf32>
    %43 = arith.andi %41, %42 : vector<8x128xi1>
    %cst_19 = arith.constant 0.000000e+00 : f32
    %44 = vector.broadcast %cst_19 : f32 to vector<8x128xf32>
    %45 = arith.select %43, %40, %44 : vector<8x128xi1>, vector<8x128xf32>
    %46 = arith.addf %36, %37 : vector<8x128xf32>
    %47 = arith.subf %46, %45 : vector<8x128xf32>
    %cst_20 = arith.constant 1.000000e-16 : f32
    %48 = vector.broadcast %cst_20 : f32 to vector<8x128xf32>
    %49 = arith.addf %47, %48 : vector<8x128xf32>
    %50 = arith.divf %45, %49 : vector<8x128xf32>
    %51 = arith.mulf %50, %50 : vector<8x128xf32>
    %cst_21 = arith.constant 1.000000e+00 : f32
    %52 = vector.broadcast %cst_21 : f32 to vector<8x128xf32>
    %53 = arith.subf %52, %51 : vector<8x128xf32>
    %c0_22 = arith.constant 0 : index
    %c0_23 = arith.constant 0 : index
    %54 = vector.load %arg2[%c0_22, %c0_23] : memref<8x128xf32, #tpu.memory_space<vmem>>, vector<8x128xf32>
    tpu.vector_store %arg2[%c0_22, %c0_23], %53 {strides = array<i32>} : memref<8x128xf32, #tpu.memory_space<vmem>>, vector<8x128xf32>,
    return
  }
  func.func @transform_0(%arg0: i32) -> (i32, i32, i32) {
    %c0_i32 = arith.constant 0 : i32
    %c0_i32_0 = arith.constant 0 : i32
    %c0_i32_1 = arith.constant 0 : i32
    return %c0_i32, %arg0, %c0_i32_0 : i32, i32, i32
  }
  func.func @transform_1(%arg0: i32) -> (i32, i32) {
    %c0_i32 = arith.constant 0 : i32
    %c0_i32_0 = arith.constant 0 : i32
    return %arg0, %c0_i32 : i32, i32
  }
}

</mosaic_0001>

<llo_original>
// kernel: tpu_custom_call.1
$region0: #{tpu_custom_call.1}
  #allocation0 [shape = 'u32[]', space=smem, size = 0x4, offset = 0x4, fixed_abs, tag = 'smem constant byte address 0x4 - core index']
  #allocation1 [shape = 'u32[144,128]{1,0:T(1,128)}', space=vmem, size = 0x12000, scoped, tag = 'internal scratch']
  %s0 = inlined_call_operand.hbm [shape: f32[8,8,128], index: 0, kind: input, shape index: {}]
  %s1 = inlined_call_operand.hbm [shape: f32[8,128], index: 1, kind: output, shape index: {}]
  %s2 = sld [smem:[#allocation0]]
  $region18: #{tpu_custom_call.1} parent=0
    _
  %s4 = ssub.s32 1, %s2
  %s5 = scalar_select 0, %s4, %s2
  $region1: #{tpu_custom_call.1} parent=0
    #allocation2 [shape = 'u8[32768]{0}', space=vmem, size = 0x8000, scoped, tag = 'input window, operand 0, single buffered']
    #allocation3 [shape = 's32[1]{0}', space=sflag, size = 0x4, scoped, tag = 'scoped memory for tpu_custom_call.1']
    #allocation4 [shape = 's32[1]{0}', space=sflag, size = 0x4, scoped, tag = 'scoped memory for tpu_custom_call.1']
    #allocation5 [shape = 'u8[4096]{0}', space=vmem, size = 0x1000, scoped, tag = 'output window, operand 0, single buffered']
    %6 = vsyncpa [#allocation3], 0
    %7 = vsyncpa [#allocation4], 0
    // Predicated region
    $region2: #{tpu_custom_call.1} parent=1 // pred_check
      _
    $region3: #{tpu_custom_call.1} parent=1 // pred_check_branch
      %9 = sbr.rel (0) target = $region5
    $region4: #{tpu_custom_call.1} parent=1 // pred_region
      %s11 = ssub.s32 1024, 1024
      %12 = vsyncadd [#allocation3], %s11
      %s13 = sshll.u32 [#allocation2], 4
      %s14 = int_to_ptr.vmem [resolvable:$true] %s13
      %19 = dma.hbm_to_vmem [thread:$0]  %s0, 1024, %s14, [#allocation3], 128, 128, 8
    $region5: #{tpu_custom_call.1} parent=1 // pred_fallthru
      _
    // Predicated region
    $region6: #{tpu_custom_call.1} parent=1 // pred_check
      _
    $region7: #{tpu_custom_call.1} parent=1 // pred_check_branch
      %21 = sbr.rel (0) target = $region9
    $region8: #{tpu_custom_call.1} parent=1 // pred_region
      %22 = dma.done [#allocation3], 1024
    $region9: #{tpu_custom_call.1} parent=1 // pred_fallthru
      _
    %v23 = vld [vmem:[#allocation2] sm:$0xff]
    %s24 = scalar_lea.vmem [#allocation2], 8
    %v25 = vld [vmem:[%s24] sm:$0xff]
    %s26 = scalar_lea.vmem [#allocation2], 16
    %v27 = vld [vmem:[%s26] sm:$0xff]
    %s28 = scalar_lea.vmem [#allocation2], 24
    %v29 = vld [vmem:[%s28] sm:$0xff]
    %s30 = scalar_lea.vmem [#allocation2], 32
    %v31 = vld [vmem:[%s30] sm:$0xff]
    %s32 = scalar_lea.vmem [#allocation2], 40
    %v33 = vld [vmem:[%s32] sm:$0xff]
    %s34 = scalar_lea.vmem [#allocation2], 48
    %v35 = vld [vmem:[%s34] sm:$0xff]
    %s36 = scalar_lea.vmem [#allocation2], 56
    %v37 = vld [vmem:[%s36] sm:$0xff]
    %v38 = vmul.f32 %v27, 0.5
    %v39 = vmul.f32 %v29, 0.5
    %v40 = vmul.f32 %v35, 0.5
    %v41 = vmul.f32 %v37, 0.5
    %v42 = vsub.f32 %v23, %v38
    %v43 = vadd.f32 %v23, %v38
    %v44 = vsub.f32 %v25, %v39
    %v45 = vadd.f32 %v25, %v39
    %v46 = vsub.f32 %v31, %v40
    %v47 = vadd.f32 %v31, %v40
    %v48 = vsub.f32 %v33, %v41
    %v49 = vadd.f32 %v33, %v41
    %v50 = vmax.f32 %v42, %v46
    %v51 = vmax.f32 %v44, %v48
    %v52 = vmin.f32 %v43, %v47
    %v53 = vmin.f32 %v45, %v49
    %v54 = vmul.f32 %v27, %v29
    %v55 = vmul.f32 %v35, %v37
    %v56 = vsub.f32 %v52, %v50
    %v57 = vsub.f32 %v53, %v51
    %v58 = vmul.f32 %v56, %v57
    %vm59 = vcmp.lt.f32.partialorder %v50, %v52
    %vm60 = vcmp.lt.f32.partialorder %v51, %v53
    %vm61 = vmand %vm59, %vm60
    %v62 = vsel %vm61, %v58, 0.0
    %v63 = vadd.f32 %v54, %v55
    %v64 = vsub.f32 %v63, %v62
    %v65 = vadd.f32 %v64, 1e-16
    %v66 = vrcp.pop %v65
    %v67 = vmul.f32 %v62, %v66
    %v68 = vmul.f32 %v67, %v67
    %v69 = vsub.f32 1.0, %v68
    %70 = vst [vmem:[#allocation5] sm:$0xff] %v69
    // Predicated region
    $region10: #{tpu_custom_call.1} parent=1 // pred_check
      _
    $region11: #{tpu_custom_call.1} parent=1 // pred_check_branch
      %72 = sbr.rel (0) target = $region13
    $region12: #{tpu_custom_call.1} parent=1 // pred_region
      %s74 = ssub.s32 128, 128
      %75 = vsyncadd [#allocation4], %s74
      %s77 = sshll.u32 [#allocation5], 4
      %s78 = int_to_ptr.vmem [resolvable:$true] %s77
      %80 = dma.vmem_to_hbm [thread:$0]  %s78, 128, %s1, [#allocation4]
    $region13: #{tpu_custom_call.1} parent=1 // pred_fallthru
      _
    // Predicated region
    $region14: #{tpu_custom_call.1} parent=1 // pred_check
      _
    $region15: #{tpu_custom_call.1} parent=1 // pred_check_branch
      %82 = sbr.rel (0) target = $region17
    $region16: #{tpu_custom_call.1} parent=1 // pred_region
      %83 = dma.done [#allocation4], 128
    $region17: #{tpu_custom_call.1} parent=1 // pred_fallthru
      _
    %84 = vsyncpa [#allocation3], 1
    %85 = vsyncpa [#allocation4], 1

</llo_original>
